<compile_context>
chip_gen: v7x
topology: tpu7x:2x2x1
jax: 0.10.0
libtpu: 0.0.40
codegen_flags: <defaults>
</compile_context>

<pallas_src>
import functools

import jax
import jax.numpy as jnp
from jax.experimental import pallas as pl
from jax.experimental.pallas import tpu as pltpu


def _round_up(x, m):
    return ((x + m - 1) // m) * m


def fm_kernel(feat_ref, bias_ref, out_ref, *, emb_size, n_fields):
    # feat_ref: (TB, F*E) block, fields concatenated along lanes:
    #           [user(E) | item(E) | pref_0(E) ... pref_{P-1}(E)]
    # bias_ref: (1,) f32 scalar bias in SMEM
    # out_ref : (8, TB) lane-dense FM scores (8 identical rows; row 0 is used)
    E = emb_size
    # Read per-field slices from the ref (keeps live values / vreg pressure
    # small instead of materializing the whole block).
    u = feat_ref[:, 0 * E:1 * E].astype(jnp.float32)        # (TB, E) user
    v = feat_ref[:, 1 * E:2 * E].astype(jnp.float32)        # (TB, E) item

    if n_fields >= 3:
        s = feat_ref[:, 2 * E:3 * E].astype(jnp.float32)    # running pref sum
        for p in range(3, n_fields):
            s = s + feat_ref[:, p * E:(p + 1) * E].astype(jnp.float32)
        # FM identity: fm_total - fm_pref = u*v + (u+v)*sum_p(pref)  (per dim)
        fm = u * v + (u + v) * s                            # (TB, E)
    else:
        # ui-pair-only branch: full FM over two fields reduces to u*v.
        fm = u * v
    # TODO(synk): nn.Dropout(p=dr) is identity in eval mode; omitted here.

    # Reduce over E on the MXU (ones-row NT matmul).  Result arrives directly
    # as an (8, TB) lane-dense slab -> unmasked stores, contiguous writeback,
    # and the VALU/XLU stay free for the elementwise work above.
    ones = jnp.ones((8, E), jnp.float32)
    bilinear = jax.lax.dot_general(
        ones, fm, (((1,), (1,)), ((), ())),
        preferred_element_type=jnp.float32)                 # (8, TB)
    out_ref[...] = bilinear + bias_ref[0]


def fm_forward(ui_pair, preference_index, ui_emb, attri_emb, bias,
               *, max_block_bytes=8 << 20):
    """Pallas equivalent of FM.forward(ui_pair, preference_index).

    ui_pair:          (B, 2) int32 indices into ui_emb (or None)
    preference_index: (B, P) int32 indices into attri_emb (PAD row is zero)
    Returns (result (B, 1), feature_matrix_clone (B, F, E)).
    """
    if ui_pair is not None and preference_index is not None:
        feat_ui = jnp.take(ui_emb, ui_pair, axis=0)                 # (B, 2, E)
        feat_pref = jnp.take(attri_emb, preference_index, axis=0)   # (B, P, E)
        feat = jnp.concatenate([feat_ui, feat_pref], axis=1)        # (B, F, E)
    elif ui_pair is not None:
        feat = jnp.take(ui_emb, ui_pair, axis=0)                    # (B, 2, E)
    elif preference_index is not None:
        # TODO(synk): preference-only branch (full FM over preferences, no
        # subtraction) is not implemented.
        raise NotImplementedError("preference-only branch not implemented")
    else:
        return 0

    B, F, E = feat.shape
    # Free reshape (merges contiguous minor dims) - no HBM round trip, unlike
    # the previous (B,F,E)->(F,E,B) transpose.
    feat2d = feat.reshape(B, F * E)

    row_bytes = F * E * jnp.dtype(feat2d.dtype).itemsize
    # Batch tile: multiple of 128 rows, sized for ~max_block_bytes per block
    # (bytes are the binding constraint; no separate row cap).
    tb = max(128, (max_block_bytes // row_bytes) // 128 * 128)
    if B > 128:
        # Keep >= 2 grid blocks when the batch allows it so the "parallel"
        # grid axis can feed both v7x TensorCores.
        tb = min(tb, _round_up((B + 1) // 2, 128))
    tb = int(min(tb, _round_up(B, 128)))

    b_padded = _round_up(B, tb)
    if b_padded != B:
        # TODO(synk): a partial trailing block would avoid this pad copy for
        # ragged batches; kept explicit for robustness.
        feat2d = jnp.pad(feat2d, ((0, b_padded - B), (0, 0)))
    num_blocks = b_padded // tb

    # Scoped-VMEM budget: 2x lane-padded input blocks + 2x output blocks +
    # headroom.  Explicitly above v5e's 16 MiB scoped default, well under
    # v7x's 64 MiB physical VMEM per TensorCore.
    in_buf = 2 * tb * _round_up(F * E, 128) * 4
    out_buf = 2 * 8 * tb * 4
    vmem_limit = int(min(max(in_buf + out_buf + (16 << 20), 32 << 20), 56 << 20))

    kernel = functools.partial(fm_kernel, emb_size=E, n_fields=F)
    out = pl.pallas_call(
        kernel,
        out_shape=jax.ShapeDtypeStruct((8, b_padded), jnp.float32),
        grid=(num_blocks,),
        in_specs=[
            pl.BlockSpec((tb, F * E), lambda b: (b, 0)),
            pl.BlockSpec(memory_space=pltpu.SMEM),
        ],
        out_specs=pl.BlockSpec((8, tb), lambda b: (0, b)),
        compiler_params=pltpu.CompilerParams(
            dimension_semantics=("parallel",),
            vmem_limit_bytes=vmem_limit),
    )(feat2d, bias)

    result = out[0, :B].reshape(B, 1)
    return result, feat


def reference_forward(ui_pair, preference_index, ui_emb, attri_emb, bias):
    """Pure-JAX reference mirroring the PyTorch forward (eval mode)."""
    if ui_pair is not None and preference_index is not None:
        fui = jnp.take(ui_emb, ui_pair, axis=0)
        fpr = jnp.take(attri_emb, preference_index, axis=0)
        feat = jnp.concatenate([fui, fpr], axis=1)
    elif ui_pair is not None:
        feat = jnp.take(ui_emb, ui_pair, axis=0)
        fpr = None
    else:
        raise NotImplementedError
    fm = 0.5 * (jnp.sum(feat, 1, keepdims=True) ** 2
                - jnp.sum(feat * feat, 1, keepdims=True))
    if ui_pair is not None and preference_index is not None:
        fm2 = 0.5 * (jnp.sum(fpr, 1, keepdims=True) ** 2
                     - jnp.sum(fpr * fpr, 1, keepdims=True))
        fm = fm - fm2
    return jnp.sum(fm, axis=2) + bias[0], feat


if __name__ == "__main__":
    # Config (mirrors FM.__init__ shapes at small sizes)
    n_users = 10
    n_items = 20
    PAD_IDX1 = n_users + n_items            # 30
    n_attributes = 15
    PAD_IDX2 = n_attributes                 # 15 (padding row, zeroed)
    emb_size = 32
    ip = 0.01

    key = jax.random.PRNGKey(0)
    k_ui, k_at, k_bias, k_idx = jax.random.split(key, 4)

    # Deterministic parameter init (FM.init_weight semantics)
    ui_emb = 0.01 * jax.random.normal(k_ui, (PAD_IDX1 + 1, emb_size), jnp.float32)
    attri_emb = ip * jax.random.normal(k_at, (PAD_IDX2 + 1, emb_size), jnp.float32)
    attri_emb = attri_emb.at[n_attributes, :].set(0.0)   # padding_idx row zeroed
    bias = 0.01 * jax.random.normal(k_bias, (1,), jnp.float32)

    def make_inputs(key, batch, n_pref):
        k_u, k_i, k_p = jax.random.split(key, 3)
        users = jax.random.randint(k_u, (batch,), 0, n_users)
        items = jax.random.randint(k_i, (batch,), 0, n_items) + n_users
        ui_pair = jnp.stack([users, items], axis=1).astype(jnp.int32)
        pref = jax.random.randint(k_p, (batch, n_pref), 0,
                                  n_attributes).astype(jnp.int32)
        # pad last slot of second row to exercise the zeroed padding embedding
        pref = pref.at[1, n_pref - 1].set(PAD_IDX2)
        return ui_pair, pref

    ATOL, RTOL = 2e-5, 1e-4

    # --- small-batch check (single grid block, batch padded to 128 rows) ----
    B, P = 2, 4
    ui_pair, preference_index = make_inputs(k_idx, B, P)
    result, feat_clone = fm_forward(ui_pair, preference_index,
                                    ui_emb, attri_emb, bias)
    jax.block_until_ready((result, feat_clone))
    ref_result, ref_feat = reference_forward(ui_pair, preference_index,
                                             ui_emb, attri_emb, bias)
    assert result.shape == (B, 1)
    assert feat_clone.shape == (B, 2 + P, emb_size)
    assert jnp.allclose(result, ref_result, atol=ATOL, rtol=RTOL)
    assert jnp.allclose(feat_clone, ref_feat)

    # --- multi-block check (grid of 3, forced tb=128, ragged batch pad) -----
    B2 = 260
    ui_pair2, preference_index2 = make_inputs(jax.random.fold_in(k_idx, 1), B2, P)
    result2, feat_clone2 = fm_forward(ui_pair2, preference_index2,
                                      ui_emb, attri_emb, bias,
                                      max_block_bytes=128 * (2 + P) * emb_size * 4)
    jax.block_until_ready((result2, feat_clone2))
    ref_result2, ref_feat2 = reference_forward(ui_pair2, preference_index2,
                                               ui_emb, attri_emb, bias)
    assert result2.shape == (B2, 1)
    assert jnp.allclose(result2, ref_result2, atol=ATOL, rtol=RTOL)
    assert jnp.allclose(feat_clone2, ref_feat2)

    # --- default sizing check: >=2 blocks so both v7x TCs get fed -----------
    B3 = 600
    ui_pair3, preference_index3 = make_inputs(jax.random.fold_in(k_idx, 2), B3, P)
    result3, feat_clone3 = fm_forward(ui_pair3, preference_index3,
                                      ui_emb, attri_emb, bias)
    jax.block_until_ready((result3, feat_clone3))
    ref_result3, ref_feat3 = reference_forward(ui_pair3, preference_index3,
                                               ui_emb, attri_emb, bias)
    assert jnp.allclose(result3, ref_result3, atol=ATOL, rtol=RTOL)
    assert jnp.allclose(feat_clone3, ref_feat3)

    # --- ui_pair-only branch (forward(ui_pair, None), as used by get_loss) --
    B4 = 5
    ui_pair4, _ = make_inputs(jax.random.fold_in(k_idx, 3), B4, P)
    result4, feat_clone4 = fm_forward(ui_pair4, None, ui_emb, attri_emb, bias)
    jax.block_until_ready((result4, feat_clone4))
    ref_result4, ref_feat4 = reference_forward(ui_pair4, None,
                                               ui_emb, attri_emb, bias)
    assert result4.shape == (B4, 1)
    assert jnp.allclose(result4, ref_result4, atol=ATOL, rtol=RTOL)
    assert jnp.allclose(feat_clone4, ref_feat4)

    print("KERNEL_OK")
</pallas_src>

<mosaic_0001>
module attributes {stable_mosaic.version = 11 : i64} {
  func.func @fm_kernel(%arg0: i32, %arg1: memref<128x192xf32, #tpu.memory_space<vmem>>, %arg2: memref<1xf32, #tpu.memory_space<smem>>, %arg3: memref<8x128xf32, #tpu.memory_space<vmem>>) attributes {dimension_semantics = [#tpu.dimension_semantics<parallel>], iteration_bounds = array<i64: 1>, scalar_prefetch = 0 : i64, scratch_operands = 0 : i64, tpu.core_type = #tpu.core_type<tc>, window_params = [{transform_indices = @transform_0, window_bounds = array<i64: 128, 192>}, {transform_indices = @transform_1, window_bounds = array<i64: 1>}, {transform_indices = @transform_2, window_bounds = array<i64: 8, 128>}]} {
    %c0 = arith.constant 0 : index
    %c0_0 = arith.constant 0 : index
    %0 = vector.load %arg1[%c0, %c0_0] : memref<128x192xf32, #tpu.memory_space<vmem>>, vector<128x32xf32>
    %c0_1 = arith.constant 0 : index
    %c32 = arith.constant 32 : index
    %1 = vector.load %arg1[%c0_1, %c32] : memref<128x192xf32, #tpu.memory_space<vmem>>, vector<128x32xf32>
    %c0_2 = arith.constant 0 : index
    %c64 = arith.constant 64 : index
    %2 = vector.load %arg1[%c0_2, %c64] : memref<128x192xf32, #tpu.memory_space<vmem>>, vector<128x32xf32>
    %c0_3 = arith.constant 0 : index
    %c96 = arith.constant 96 : index
    %3 = vector.load %arg1[%c0_3, %c96] : memref<128x192xf32, #tpu.memory_space<vmem>>, vector<128x32xf32>
    %4 = arith.addf %2, %3 : vector<128x32xf32>
    %c0_4 = arith.constant 0 : index
    %c128 = arith.constant 128 : index
    %5 = vector.load %arg1[%c0_4, %c128] : memref<128x192xf32, #tpu.memory_space<vmem>>, vector<128x32xf32>
    %6 = arith.addf %4, %5 : vector<128x32xf32>
    %c0_5 = arith.constant 0 : index
    %c160 = arith.constant 160 : index
    %7 = vector.load %arg1[%c0_5, %c160] : memref<128x192xf32, #tpu.memory_space<vmem>>, vector<128x32xf32>
    %8 = arith.addf %6, %7 : vector<128x32xf32>
    %9 = arith.mulf %0, %1 : vector<128x32xf32>
    %10 = arith.addf %0, %1 : vector<128x32xf32>
    %11 = arith.mulf %10, %8 : vector<128x32xf32>
    %12 = arith.addf %9, %11 : vector<128x32xf32>
    %cst = arith.constant 1.000000e+00 : f32
    %13 = vector.broadcast %cst : f32 to vector<8x32xf32>
    %cst_6 = arith.constant dense<0.000000e+00> : vector<8x128xf32>
    %14 = tpu.matmul %13, %12, %cst_6 {dimension_numbers = #tpu.dot_dimension_numbers<[1], [1], [0], [0], [0, 0, 1, 0], [], []>} : vector<8x32xf32>, vector<128x32xf32>, vector<8x128xf32> -> vector<8x128xf32>
    %c0_7 = arith.constant 0 : index
    %15 = memref.load %arg2[%c0_7] : memref<1xf32, #tpu.memory_space<smem>>
    %16 = vector.broadcast %15 : f32 to vector<8x128xf32>
    %17 = arith.addf %14, %16 : vector<8x128xf32>
    %c0_8 = arith.constant 0 : index
    %c0_9 = arith.constant 0 : index
    %18 = vector.load %arg3[%c0_8, %c0_9] : memref<8x128xf32, #tpu.memory_space<vmem>>, vector<8x128xf32>
    tpu.vector_store %arg3[%c0_8, %c0_9], %17 {strides = array<i32>} : memref<8x128xf32, #tpu.memory_space<vmem>>, vector<8x128xf32>,
    return
  }
  func.func @transform_0(%arg0: i32) -> (i32, i32) {
    %c0_i32 = arith.constant 0 : i32
    %c0_i32_0 = arith.constant 0 : i32
    return %arg0, %c0_i32 : i32, i32
  }
  func.func @transform_1(%arg0: i32) -> i32 {
    %c0_i32 = arith.constant 0 : i32
    %c0_i32_0 = arith.constant 0 : i32
    return %c0_i32 : i32
  }
  func.func @transform_2(%arg0: i32) -> (i32, i32) {
    %c0_i32 = arith.constant 0 : i32
    %c0_i32_0 = arith.constant 0 : i32
    return %c0_i32, %arg0 : i32, i32
  }
}

</mosaic_0001>

<llo_original>
// kernel: tpu_custom_call.1
$region0: #{tpu_custom_call.1}
  #allocation0 [shape = 'u32[]', space=smem, size = 0x4, offset = 0x4, fixed_abs, tag = 'smem constant byte address 0x4 - core index']
  #allocation1 [shape = 'u32[144,128]{1,0:T(1,128)}', space=vmem, size = 0x12000, scoped, tag = 'internal scratch']
  #allocation2 [shape = 'f32[1]{0:T(128)S(6)}', space=smem, size = 0x200, scoped, tag = 'scoped memory for tpu_custom_call.1']
  %s0 = inlined_call_operand.vmem [shape: f32[128,192], index: 0, kind: input, shape index: {}]
  %s1 = inlined_call_operand.<no memory space> [shape: f32[1], index: 1, kind: input, shape index: {}]
  %s2 = inlined_call_operand.hbm [shape: f32[8,128], index: 2, kind: output, shape index: {}]
  %s3 = sld [smem:[#allocation0]]
  $region18: #{tpu_custom_call.1} parent=0
    _
  %s5 = ssub.s32 1, %s3
  %s6 = scalar_select 0, %s5, %s3
  %7 = sst [smem:[#allocation2]] %s1
  $region1: #{tpu_custom_call.1} parent=0
    #allocation3 [shape = 'u8[4096]{0}', space=vmem, size = 0x1000, scoped, tag = 'output window, operand 0, single buffered']
    #allocation4 [shape = 's32[1]{0}', space=sflag, size = 0x4, scoped, tag = 'scoped memory for tpu_custom_call.1']
    %8 = vsyncpa [#allocation4], 0
    // Predicated region
    $region2: #{tpu_custom_call.1} parent=1 // pred_check
      _
    $region3: #{tpu_custom_call.1} parent=1 // pred_check_branch
      %10 = sbr.rel (0) target = $region5
    $region4: #{tpu_custom_call.1} parent=1 // pred_region
      _
    $region5: #{tpu_custom_call.1} parent=1 // pred_fallthru
      _
    // Predicated region
    $region6: #{tpu_custom_call.1} parent=1 // pred_check
      _
    $region7: #{tpu_custom_call.1} parent=1 // pred_check_branch
      %12 = sbr.rel (0) target = $region9
    $region8: #{tpu_custom_call.1} parent=1 // pred_region
      _
    $region9: #{tpu_custom_call.1} parent=1 // pred_fallthru
      _
    %v13 = vld [vmem:[%s0] sm:$0xff]
    %v14 = vld [vmem:[%s0 + $0x10] sm:$0xff]
    %v15 = vld [vmem:[%s0 + $0x20] sm:$0xff]
    %v16 = vld [vmem:[%s0 + $0x30] sm:$0xff]
    %v17 = vld [vmem:[%s0 + $0x40] sm:$0xff]
    %v18 = vld [vmem:[%s0 + $0x50] sm:$0xff]
    %v19 = vld [vmem:[%s0 + $0x60] sm:$0xff]
    %v20 = vld [vmem:[%s0 + $0x70] sm:$0xff]
    %v21 = vld [vmem:[%s0 + $0x80] sm:$0xff]
    %v22 = vld [vmem:[%s0 + $0x90] sm:$0xff]
    %v23 = vld [vmem:[%s0 + $0xa0] sm:$0xff]
    %v24 = vld [vmem:[%s0 + $0xb0] sm:$0xff]
    %v25 = vld [vmem:[%s0 + $0xc0] sm:$0xff]
    %v26 = vld [vmem:[%s0 + $0xd0] sm:$0xff]
    %v27 = vld [vmem:[%s0 + $0xe0] sm:$0xff]
    %v28 = vld [vmem:[%s0 + $0xf0] sm:$0xff]
    %45 = vrot.lane.b32.xlu0 %v13, 96
    %v46 = vpop.permute.xlu0 %45
    %47 = vrot.lane.b32.xlu0 %v14, 96
    %v48 = vpop.permute.xlu0 %47
    %49 = vrot.lane.b32.xlu0 %v15, 96
    %v50 = vpop.permute.xlu0 %49
    %51 = vrot.lane.b32.xlu0 %v16, 96
    %v52 = vpop.permute.xlu0 %51
    %53 = vrot.lane.b32.xlu0 %v17, 96
    %v54 = vpop.permute.xlu0 %53
    %55 = vrot.lane.b32.xlu0 %v18, 96
    %v56 = vpop.permute.xlu0 %55
    %57 = vrot.lane.b32.xlu0 %v19, 96
    %v58 = vpop.permute.xlu0 %57
    %59 = vrot.lane.b32.xlu0 %v20, 96
    %v60 = vpop.permute.xlu0 %59
    %61 = vrot.lane.b32.xlu0 %v21, 96
    %v62 = vpop.permute.xlu0 %61
    %63 = vrot.lane.b32.xlu0 %v22, 96
    %v64 = vpop.permute.xlu0 %63
    %65 = vrot.lane.b32.xlu0 %v23, 96
    %v66 = vpop.permute.xlu0 %65
    %67 = vrot.lane.b32.xlu0 %v24, 96
    %v68 = vpop.permute.xlu0 %67
    %69 = vrot.lane.b32.xlu0 %v25, 96
    %v70 = vpop.permute.xlu0 %69
    %71 = vrot.lane.b32.xlu0 %v26, 96
    %v72 = vpop.permute.xlu0 %71
    %73 = vrot.lane.b32.xlu0 %v27, 96
    %v74 = vpop.permute.xlu0 %73
    %75 = vrot.lane.b32.xlu0 %v28, 96
    %v76 = vpop.permute.xlu0 %75
    %v93 = vadd.f32 %v13, %v46
    %v94 = vadd.f32 %v14, %v48
    %v95 = vadd.f32 %v15, %v50
    %v96 = vadd.f32 %v16, %v52
    %v97 = vadd.f32 %v17, %v54
    %v98 = vadd.f32 %v18, %v56
    %v99 = vadd.f32 %v19, %v58
    %v100 = vadd.f32 %v20, %v60
    %v101 = vadd.f32 %v21, %v62
    %v102 = vadd.f32 %v22, %v64
    %v103 = vadd.f32 %v23, %v66
    %v104 = vadd.f32 %v24, %v68
    %v105 = vadd.f32 %v25, %v70
    %v106 = vadd.f32 %v26, %v72
    %v107 = vadd.f32 %v27, %v74
    %v108 = vadd.f32 %v28, %v76
    %v109 = vld [vmem:[%s0 + $0x8] sm:$0xff]
    %v110 = vld [vmem:[%s0 + $0x18] sm:$0xff]
    %v111 = vld [vmem:[%s0 + $0x28] sm:$0xff]
    %v112 = vld [vmem:[%s0 + $0x38] sm:$0xff]
    %v113 = vld [vmem:[%s0 + $0x48] sm:$0xff]
    %v114 = vld [vmem:[%s0 + $0x58] sm:$0xff]
    %v115 = vld [vmem:[%s0 + $0x68] sm:$0xff]
    %v116 = vld [vmem:[%s0 + $0x78] sm:$0xff]
    %v117 = vld [vmem:[%s0 + $0x88] sm:$0xff]
    %v118 = vld [vmem:[%s0 + $0x98] sm:$0xff]
    %v119 = vld [vmem:[%s0 + $0xa8] sm:$0xff]
    %v120 = vld [vmem:[%s0 + $0xb8] sm:$0xff]
    %v121 = vld [vmem:[%s0 + $0xc8] sm:$0xff]
    %v122 = vld [vmem:[%s0 + $0xd8] sm:$0xff]
    %v123 = vld [vmem:[%s0 + $0xe8] sm:$0xff]
    %v124 = vld [vmem:[%s0 + $0xf8] sm:$0xff]
    %141 = vrot.lane.b32.xlu0 %v109, 64
    %v142 = vpop.permute.xlu0 %141
    %143 = vrot.lane.b32.xlu0 %v110, 64
    %v144 = vpop.permute.xlu0 %143
    %145 = vrot.lane.b32.xlu0 %v111, 64
    %v146 = vpop.permute.xlu0 %145
    %147 = vrot.lane.b32.xlu0 %v112, 64
    %v148 = vpop.permute.xlu0 %147
    %149 = vrot.lane.b32.xlu0 %v113, 64
    %v150 = vpop.permute.xlu0 %149
    %151 = vrot.lane.b32.xlu0 %v114, 64
    %v152 = vpop.permute.xlu0 %151
    %153 = vrot.lane.b32.xlu0 %v115, 64
    %v154 = vpop.permute.xlu0 %153
    %155 = vrot.lane.b32.xlu0 %v116, 64
    %v156 = vpop.permute.xlu0 %155
    %157 = vrot.lane.b32.xlu0 %v117, 64
    %v158 = vpop.permute.xlu0 %157
    %159 = vrot.lane.b32.xlu0 %v118, 64
    %v160 = vpop.permute.xlu0 %159
    %161 = vrot.lane.b32.xlu0 %v119, 64
    %v162 = vpop.permute.xlu0 %161
    %163 = vrot.lane.b32.xlu0 %v120, 64
    %v164 = vpop.permute.xlu0 %163
    %165 = vrot.lane.b32.xlu0 %v121, 64
    %v166 = vpop.permute.xlu0 %165
    %167 = vrot.lane.b32.xlu0 %v122, 64
    %v168 = vpop.permute.xlu0 %167
    %169 = vrot.lane.b32.xlu0 %v123, 64
    %v170 = vpop.permute.xlu0 %169
    %171 = vrot.lane.b32.xlu0 %v124, 64
    %v172 = vpop.permute.xlu0 %171
    %v189 = vadd.f32 %v93, %v142
    %v190 = vadd.f32 %v94, %v144
    %v191 = vadd.f32 %v95, %v146
    %v192 = vadd.f32 %v96, %v148
    %v193 = vadd.f32 %v97, %v150
    %v194 = vadd.f32 %v98, %v152
    %v195 = vadd.f32 %v99, %v154
    %v196 = vadd.f32 %v100, %v156
    %v197 = vadd.f32 %v101, %v158
    %v198 = vadd.f32 %v102, %v160
    %v199 = vadd.f32 %v103, %v162
    %v200 = vadd.f32 %v104, %v164
    %v201 = vadd.f32 %v105, %v166
    %v202 = vadd.f32 %v106, %v168
    %v203 = vadd.f32 %v107, %v170
    %v204 = vadd.f32 %v108, %v172
    %205 = vrot.lane.b32.xlu0 %v109, 32
    %v206 = vpop.permute.xlu0 %205
    %207 = vrot.lane.b32.xlu0 %v110, 32
    %v208 = vpop.permute.xlu0 %207
    %209 = vrot.lane.b32.xlu0 %v111, 32
    %v210 = vpop.permute.xlu0 %209
    %211 = vrot.lane.b32.xlu0 %v112, 32
    %v212 = vpop.permute.xlu0 %211
    %213 = vrot.lane.b32.xlu0 %v113, 32
    %v214 = vpop.permute.xlu0 %213
    %215 = vrot.lane.b32.xlu0 %v114, 32
    %v216 = vpop.permute.xlu0 %215
    %217 = vrot.lane.b32.xlu0 %v115, 32
    %v218 = vpop.permute.xlu0 %217
    %219 = vrot.lane.b32.xlu0 %v116, 32
    %v220 = vpop.permute.xlu0 %219
    %221 = vrot.lane.b32.xlu0 %v117, 32
    %v222 = vpop.permute.xlu0 %221
    %223 = vrot.lane.b32.xlu0 %v118, 32
    %v224 = vpop.permute.xlu0 %223
    %225 = vrot.lane.b32.xlu0 %v119, 32
    %v226 = vpop.permute.xlu0 %225
    %227 = vrot.lane.b32.xlu0 %v120, 32
    %v228 = vpop.permute.xlu0 %227
    %229 = vrot.lane.b32.xlu0 %v121, 32
    %v230 = vpop.permute.xlu0 %229
    %231 = vrot.lane.b32.xlu0 %v122, 32
    %v232 = vpop.permute.xlu0 %231
    %233 = vrot.lane.b32.xlu0 %v123, 32
    %v234 = vpop.permute.xlu0 %233
    %235 = vrot.lane.b32.xlu0 %v124, 32
    %v236 = vpop.permute.xlu0 %235
    %v253 = vadd.f32 %v189, %v206
    %v254 = vadd.f32 %v190, %v208
    %v255 = vadd.f32 %v191, %v210
    %v256 = vadd.f32 %v192, %v212
    %v257 = vadd.f32 %v193, %v214
    %v258 = vadd.f32 %v194, %v216
    %v259 = vadd.f32 %v195, %v218
    %v260 = vadd.f32 %v196, %v220
    %v261 = vadd.f32 %v197, %v222
    %v262 = vadd.f32 %v198, %v224
    %v263 = vadd.f32 %v199, %v226
    %v264 = vadd.f32 %v200, %v228
    %v265 = vadd.f32 %v201, %v230
    %v266 = vadd.f32 %v202, %v232
    %v267 = vadd.f32 %v203, %v234
    %v268 = vadd.f32 %v204, %v236
    %v269 = vmul.f32 %v13, %v46
    %v270 = vmul.f32 %v14, %v48
    %v271 = vmul.f32 %v15, %v50
    %v272 = vmul.f32 %v16, %v52
    %v273 = vmul.f32 %v17, %v54
    %v274 = vmul.f32 %v18, %v56
    %v275 = vmul.f32 %v19, %v58
    %v276 = vmul.f32 %v20, %v60
    %v277 = vmul.f32 %v21, %v62
    %v278 = vmul.f32 %v22, %v64
    %v279 = vmul.f32 %v23, %v66
    %v280 = vmul.f32 %v24, %v68
    %v281 = vmul.f32 %v25, %v70
    %v282 = vmul.f32 %v26, %v72
    %v283 = vmul.f32 %v27, %v74
    %v284 = vmul.f32 %v28, %v76
    %301 = vrot.lane.b32.xlu0 %v253, 64
    %v302 = vpop.permute.xlu0 %301
    %303 = vrot.lane.b32.xlu0 %v254, 64
    %v304 = vpop.permute.xlu0 %303
    %305 = vrot.lane.b32.xlu0 %v255, 64
    %v306 = vpop.permute.xlu0 %305
    %307 = vrot.lane.b32.xlu0 %v256, 64
    %v308 = vpop.permute.xlu0 %307
    %309 = vrot.lane.b32.xlu0 %v257, 64
    %v310 = vpop.permute.xlu0 %309
    %311 = vrot.lane.b32.xlu0 %v258, 64
    %v312 = vpop.permute.xlu0 %311
    %313 = vrot.lane.b32.xlu0 %v259, 64
    %v314 = vpop.permute.xlu0 %313
    %315 = vrot.lane.b32.xlu0 %v260, 64
    %v316 = vpop.permute.xlu0 %315
    %317 = vrot.lane.b32.xlu0 %v261, 64
    %v318 = vpop.permute.xlu0 %317
    %319 = vrot.lane.b32.xlu0 %v262, 64
    %v320 = vpop.permute.xlu0 %319
    %321 = vrot.lane.b32.xlu0 %v263, 64
    %v322 = vpop.permute.xlu0 %321
    %323 = vrot.lane.b32.xlu0 %v264, 64
    %v324 = vpop.permute.xlu0 %323
    %325 = vrot.lane.b32.xlu0 %v265, 64
    %v326 = vpop.permute.xlu0 %325
    %327 = vrot.lane.b32.xlu0 %v266, 64
    %v328 = vpop.permute.xlu0 %327
    %329 = vrot.lane.b32.xlu0 %v267, 64
    %v330 = vpop.permute.xlu0 %329
    %331 = vrot.lane.b32.xlu0 %v268, 64
    %v332 = vpop.permute.xlu0 %331
    %v349 = vmul.f32 %v93, %v302
    %v350 = vmul.f32 %v94, %v304
    %v351 = vmul.f32 %v95, %v306
    %v352 = vmul.f32 %v96, %v308
    %v353 = vmul.f32 %v97, %v310
    %v354 = vmul.f32 %v98, %v312
    %v355 = vmul.f32 %v99, %v314
    %v356 = vmul.f32 %v100, %v316
    %v357 = vmul.f32 %v101, %v318
    %v358 = vmul.f32 %v102, %v320
    %v359 = vmul.f32 %v103, %v322
    %v360 = vmul.f32 %v104, %v324
    %v361 = vmul.f32 %v105, %v326
    %v362 = vmul.f32 %v106, %v328
    %v363 = vmul.f32 %v107, %v330
    %v364 = vmul.f32 %v108, %v332
    %v365 = vadd.f32 %v269, %v349
    %v366 = vadd.f32 %v270, %v350
    %v367 = vadd.f32 %v271, %v351
    %v368 = vadd.f32 %v272, %v352
    %v369 = vadd.f32 %v273, %v353
    %v370 = vadd.f32 %v274, %v354
    %v371 = vadd.f32 %v275, %v355
    %v372 = vadd.f32 %v276, %v356
    %v373 = vadd.f32 %v277, %v357
    %v374 = vadd.f32 %v278, %v358
    %v375 = vadd.f32 %v279, %v359
    %v376 = vadd.f32 %v280, %v360
    %v377 = vadd.f32 %v281, %v361
    %v378 = vadd.f32 %v282, %v362
    %v379 = vadd.f32 %v283, %v363
    %v380 = vadd.f32 %v284, %v364
    %s381 = sld [smem:[#allocation2]]
    %v382 = vstv %s381
    %vm383 = vcmask 261120
    %v385 = vsel %vm383, 1.0, 0
    %v388 = vsel %vm383, %v365, 0
    %v391 = vsel %vm383, %v366, 0
    %v394 = vsel %vm383, %v367, 0
    %v397 = vsel %vm383, %v368, 0
    %v400 = vsel %vm383, %v369, 0
    %v403 = vsel %vm383, %v370, 0
    %v406 = vsel %vm383, %v371, 0
    %v409 = vsel %vm383, %v372, 0
    %v412 = vsel %vm383, %v373, 0
    %v415 = vsel %vm383, %v374, 0
    %v418 = vsel %vm383, %v375, 0
    %v421 = vsel %vm383, %v376, 0
    %v424 = vsel %vm383, %v377, 0
    %v427 = vsel %vm383, %v378, 0
    %v430 = vsel %vm383, %v379, 0
    %v433 = vsel %vm383, %v380, 0
    %435 = vmatprep.subr.mxu0 0.0
    %436 = vmatpush1.xpose.msra.mxu0 %v388
    %437 = vmatprep.subr.mxu0 0.0
    %438 = vmatpush1.xpose.msra.mxu0 %v391
    %439 = vmatprep.subr.mxu0 0.0
    %440 = vmatpush1.xpose.msra.mxu0 %v394
    %441 = vmatprep.subr.mxu0 0.0
    %442 = vmatpush1.xpose.msra.mxu0 %v397
    %443 = vmatprep.subr.mxu0 0.0
    %444 = vmatpush1.xpose.msra.mxu0 %v400
    %445 = vmatprep.subr.mxu0 0.0
    %446 = vmatpush1.xpose.msra.mxu0 %v403
    %447 = vmatprep.subr.mxu0 0.0
    %448 = vmatpush1.xpose.msra.mxu0 %v406
    %449 = vmatprep.subr.mxu0 0.0
    %450 = vmatpush1.xpose.msra.mxu0 %v409
    %451 = vmatprep.subr.mxu0 0.0
    %452 = vmatpush1.xpose.msra.mxu0 %v412
    %453 = vmatprep.subr.mxu0 0.0
    %454 = vmatpush1.xpose.msra.mxu0 %v415
    %455 = vmatprep.subr.mxu0 0.0
    %456 = vmatpush1.xpose.msra.mxu0 %v418
    %457 = vmatprep.subr.mxu0 0.0
    %458 = vmatpush1.xpose.msra.mxu0 %v421
    %459 = vmatprep.subr.mxu0 0.0
    %460 = vmatpush1.xpose.msra.mxu0 %v424
    %461 = vmatprep.subr.mxu0 0.0
    %462 = vmatpush1.xpose.msra.mxu0 %v427
    %463 = vmatprep.subr.mxu0 0.0
    %464 = vmatpush1.xpose.msra.mxu0 %v430
    %465 = vmatprep.subr.mxu0 0.0
    %466 = vmatpush1.xpose.msra.mxu0 %v433
    %467 = vmatprep.subr.mxu0 0.0
    %468 = vmatpush1.xpose.msra.mxu0 0.0
    %469 = vmatprep.subr.mxu0 0.0
    %470 = vmatpush1.xpose.msra.mxu0 0.0
    %471 = vmatprep.subr.mxu0 0.0
    %472 = vmatpush1.xpose.msra.mxu0 0.0
    %473 = vmatprep.subr.mxu0 0.0
    %474 = vmatpush1.xpose.msra.mxu0 0.0
    %475 = vmatprep.subr.mxu0 0.0
    %476 = vmatpush1.xpose.msra.mxu0 0.0
    %477 = vmatprep.subr.mxu0 0.0
    %478 = vmatpush1.xpose.msra.mxu0 0.0
    %479 = vmatprep.subr.mxu0 0.0
    %480 = vmatpush1.xpose.msra.mxu0 0.0
    %481 = vmatprep.subr.mxu0 0.0
    %482 = vmatpush1.xpose.msra.mxu0 0.0
    %483 = vmatprep.subr.mxu0 0.0
    %484 = vmatpush1.xpose.msra.mxu0 0.0
    %485 = vmatprep.subr.mxu0 0.0
    %486 = vmatpush1.xpose.msra.mxu0 0.0
    %487 = vmatprep.subr.mxu0 0.0
    %488 = vmatpush1.xpose.msra.mxu0 0.0
    %489 = vmatprep.subr.mxu0 0.0
    %490 = vmatpush1.xpose.msra.mxu0 0.0
    %491 = vmatprep.subr.mxu0 0.0
    %492 = vmatpush1.xpose.msra.mxu0 0.0
    %493 = vmatprep.subr.mxu0 0.0
    %494 = vmatpush1.xpose.msra.mxu0 0.0
    %495 = vmatprep.subr.mxu0 0.0
    %496 = vmatpush1.xpose.msra.mxu0 0.0
    %497 = vmatprep.subr.mxu0 0.0
    %498 = vmatpush1.xpose.msra.mxu0 0.0
    %499 = vmatprep.mubr.f32.mxu0 0.0
    %500 = vmatmul.mubr.f32.gmra.mrb[0].mxu0 %v385
    %v501 = vpop.f32.mrb[0].mxu0
    %v502 = vadd.f32 %v382, %v501
    %v503 = vpop.f32.mrb[0].mxu0
    %504 = vdwg.mxu0
    %505 = vst [vmem:[#allocation3] sm:$0xff] %v502
    // Predicated region
    $region10: #{tpu_custom_call.1} parent=1 // pred_check
      _
    $region11: #{tpu_custom_call.1} parent=1 // pred_check_branch
      %507 = sbr.rel (0) target = $region13
    $region12: #{tpu_custom_call.1} parent=1 // pred_region
      %s509 = ssub.s32 128, 128
      %510 = vsyncadd [#allocation4], %s509
      %s512 = sshll.u32 [#allocation3], 4
      %s513 = int_to_ptr.vmem [resolvable:$true] %s512
      %515 = dma.vmem_to_hbm [thread:$0]  %s513, 128, %s2, [#allocation4]
    $region13: #{tpu_custom_call.1} parent=1 // pred_fallthru
      _
    // Predicated region
    $region14: #{tpu_custom_call.1} parent=1 // pred_check
      _
    $region15: #{tpu_custom_call.1} parent=1 // pred_check_branch
      %517 = sbr.rel (0) target = $region17
    $region16: #{tpu_custom_call.1} parent=1 // pred_region
      %518 = dma.done [#allocation4], 128
    $region17: #{tpu_custom_call.1} parent=1 // pred_fallthru
      _
    %519 = vsyncpa [#allocation4], 1

</llo_original>
